<compile_context>
chip_gen: v6e
topology: v6e:2x2x1
jax: 0.10.0
libtpu: 0.0.40
codegen_flags: <defaults>
</compile_context>

<pallas_src>
import numpy as np
import jax
import jax.numpy as jnp
from jax.experimental import pallas as pl
from jax.experimental.pallas import tpu as pltpu


def _round_up(x, m):
    return ((x + m - 1) // m) * m


# ----------------------------- Pallas kernels --------------------------------
def _conv1x1_kernel_small_c(w_ref, x_ref, o_ref):
    """VPU path for tiny C:  y[o, :] = sum_i W[o, i] * x[i, :].

    w_ref: (C, C) in SMEM (cheap scalar reads)
    x_ref: (C, TS) lane-dense input tile in VMEM
    o_ref: (C, TS) lane-dense output tile in VMEM
    """
    C = x_ref.shape[0]
    for o in range(C):  # statically unrolled (C is tiny)
        acc = x_ref[0:1, :] * w_ref[o, 0]
        for i in range(1, C):
            acc = acc + x_ref[i:i + 1, :] * w_ref[o, i]
        o_ref[o:o + 1, :] = acc.astype(o_ref.dtype)


def _conv1x1_kernel_mxu(w_ref, x_ref, o_ref):
    """MXU path for larger C:  y = W @ x_tile."""
    o_ref[...] = jnp.dot(
        w_ref[...], x_ref[...], preferred_element_type=jnp.float32
    ).astype(o_ref.dtype)


def conv1x1_pallas(x3, w, *, ts=2048):
    """y3[n] = w @ x3[n] for x3 of shape (N, C, S), lane-dense tiling over S.

    `ts` is the spatial tile size (rounded to a multiple of 128); sweep it per
    TPU generation (bigger on v7x).
    """
    N, C, S = x3.shape
    TS = min(_round_up(ts, 128), _round_up(S, 128))
    S_pad = _round_up(S, TS)
    if S_pad != S:
        x3 = jnp.pad(x3, ((0, 0), (0, 0), (0, S_pad - S)))
    grid = (N, S_pad // TS)

    small_c = C <= 8
    if small_c:
        kernel = _conv1x1_kernel_small_c
        w_spec = pl.BlockSpec(memory_space=pltpu.MemorySpace.SMEM)
    else:
        kernel = _conv1x1_kernel_mxu
        w_spec = pl.BlockSpec((C, C), lambda n, s: (0, 0))

    itemsize = jnp.dtype(x3.dtype).itemsize
    cost = pl.CostEstimate(
        flops=2 * N * S_pad * C * C,
        transcendentals=0,
        bytes_accessed=2 * N * C * S_pad * itemsize + C * C * 4,
    )

    y3 = pl.pallas_call(
        kernel,
        out_shape=jax.ShapeDtypeStruct((N, C, S_pad), x3.dtype),
        grid_spec=pltpu.PrefetchScalarGridSpec(
            num_scalar_prefetch=0,
            grid=grid,
            in_specs=[
                w_spec,
                # block dim 0 is squeezed (None): kernel sees a (C, TS) tile
                pl.BlockSpec((None, C, TS), lambda n, s: (n, 0, s)),
            ],
            out_specs=pl.BlockSpec((None, C, TS), lambda n, s: (n, 0, s)),
        ),
        compiler_params=pltpu.CompilerParams(
            dimension_semantics=("parallel", "parallel")
        ),
        cost_estimate=cost,
    )(w, x3)

    if S_pad != S:
        y3 = y3[:, :, :S]
    return y3


# ------------------------------ Module glue ---------------------------------
class InvertibleConv1x1:
    """JAX/Pallas port of the PyTorch InvertibleConv1x1 forward pass."""

    def __init__(self, in_channels, train_sampling=True, seed=0):
        # Deterministic init matching the PyTorch module: QR of a random
        # normal (in_channels, in_channels) matrix.
        rng = np.random.RandomState(seed)
        w_init = np.linalg.qr(rng.randn(in_channels, in_channels))[0].astype(
            np.float32
        )
        self.w_shape = (in_channels, in_channels)
        self.train_sampling = train_sampling
        self.weight = jnp.asarray(w_init)

    def _log_determinant(self, x, W):
        h, w = x.shape[2], x.shape[3]
        # Stable log|det| via slogdet (reference: float64 det then log|.|).
        _sign, logabsdet = jnp.linalg.slogdet(W.astype(jnp.float32))
        # Reference nudges det==0 -> 1e-6 before the log; emulate that for
        # the singular edge case (slogdet returns -inf there).
        logabsdet = jnp.where(jnp.isfinite(logabsdet), logabsdet, jnp.log(1e-6))
        return (h * w) * logabsdet

    def forward(self, x, *, ts=2048):
        # x: (N, C, H, W) float32 — same convention as the PyTorch module.
        if self.train_sampling:
            W = jnp.linalg.inv(self.weight).astype(jnp.float32)
        else:
            W = self.weight
        logdet = self._log_determinant(x, W)

        N, C, H, Wd = x.shape
        x3 = x.reshape(N, C, H * Wd)        # free reshape, stays NCHW-ordered
        y3 = conv1x1_pallas(x3, W, ts=ts)   # Pallas hot path: y = W @ x
        y = y3.reshape(N, C, H, Wd)
        return y, logdet

    def __call__(self, x):
        return self.forward(x)


# --------------------------------- Main --------------------------------------
if __name__ == "__main__":
    key = jax.random.PRNGKey(0)
    N, C, H, W = 2, 4, 16, 16
    x = jax.random.normal(key, (N, C, H, W), dtype=jnp.float32)

    layer = InvertibleConv1x1(in_channels=C, train_sampling=True, seed=0)
    y, logdet = layer(x)
    y = jax.block_until_ready(y)
    logdet = jax.block_until_ready(logdet)

    # Sanity check against a pure-JAX reference of the 1x1 conv.
    W_eff = jnp.linalg.inv(layer.weight).astype(jnp.float32)
    y_ref = jnp.einsum(
        "oi,nihw->nohw", W_eff, x, precision=jax.lax.Precision.HIGHEST
    )
    assert y.shape == (N, C, H, W)
    assert jnp.allclose(y, y_ref, atol=1e-4), "mismatch vs reference"
    assert bool(jnp.isfinite(logdet))

    print("KERNEL_OK")
</pallas_src>

<mosaic_0001>
module attributes {stable_mosaic.version = 11 : i64} {
  func.func @_conv1x1_kernel_small_c(%arg0: i32, %arg1: i32, %arg2: memref<4x4xf32, #tpu.memory_space<smem>>, %arg3: memref<1x4x256xf32, #tpu.memory_space<vmem>>, %arg4: memref<1x4x256xf32, #tpu.memory_space<vmem>>) attributes {dimension_semantics = [#tpu.dimension_semantics<parallel>, #tpu.dimension_semantics<parallel>], iteration_bounds = array<i64: 2, 1>, scalar_prefetch = 0 : i64, scratch_operands = 0 : i64, tpu.core_type = #tpu.core_type<tc>, window_params = [{transform_indices = @transform_0, window_bounds = array<i64: 4, 4>}, {transform_indices = @transform_1, window_bounds = array<i64: 1, 4, 256>}, {transform_indices = @transform_2, window_bounds = array<i64: 1, 4, 256>}]} {
    %c0 = arith.constant 0 : index
    %c0_0 = arith.constant 0 : index
    %c0_1 = arith.constant 0 : index
    %0 = vector.load %arg3[%c0, %c0_0, %c0_1] : memref<1x4x256xf32, #tpu.memory_space<vmem>>, vector<1x1x256xf32>
    %1 = vector.shape_cast %0 : vector<1x1x256xf32> to vector<1x256xf32>
    %c0_2 = arith.constant 0 : index
    %c0_3 = arith.constant 0 : index
    %2 = memref.load %arg2[%c0_2, %c0_3] : memref<4x4xf32, #tpu.memory_space<smem>>
    %3 = vector.broadcast %2 : f32 to vector<1x256xf32>
    %4 = arith.mulf %1, %3 : vector<1x256xf32>
    %c0_4 = arith.constant 0 : index
    %c1 = arith.constant 1 : index
    %c0_5 = arith.constant 0 : index
    %5 = vector.load %arg3[%c0_4, %c1, %c0_5] : memref<1x4x256xf32, #tpu.memory_space<vmem>>, vector<1x1x256xf32>
    %6 = vector.shape_cast %5 : vector<1x1x256xf32> to vector<1x256xf32>
    %c0_6 = arith.constant 0 : index
    %c1_7 = arith.constant 1 : index
    %7 = memref.load %arg2[%c0_6, %c1_7] : memref<4x4xf32, #tpu.memory_space<smem>>
    %8 = vector.broadcast %7 : f32 to vector<1x256xf32>
    %9 = arith.mulf %6, %8 : vector<1x256xf32>
    %10 = arith.addf %4, %9 : vector<1x256xf32>
    %c0_8 = arith.constant 0 : index
    %c2 = arith.constant 2 : index
    %c0_9 = arith.constant 0 : index
    %11 = vector.load %arg3[%c0_8, %c2, %c0_9] : memref<1x4x256xf32, #tpu.memory_space<vmem>>, vector<1x1x256xf32>
    %12 = vector.shape_cast %11 : vector<1x1x256xf32> to vector<1x256xf32>
    %c0_10 = arith.constant 0 : index
    %c2_11 = arith.constant 2 : index
    %13 = memref.load %arg2[%c0_10, %c2_11] : memref<4x4xf32, #tpu.memory_space<smem>>
    %14 = vector.broadcast %13 : f32 to vector<1x256xf32>
    %15 = arith.mulf %12, %14 : vector<1x256xf32>
    %16 = arith.addf %10, %15 : vector<1x256xf32>
    %c0_12 = arith.constant 0 : index
    %c3 = arith.constant 3 : index
    %c0_13 = arith.constant 0 : index
    %17 = vector.load %arg3[%c0_12, %c3, %c0_13] : memref<1x4x256xf32, #tpu.memory_space<vmem>>, vector<1x1x256xf32>
    %18 = vector.shape_cast %17 : vector<1x1x256xf32> to vector<1x256xf32>
    %c0_14 = arith.constant 0 : index
    %c3_15 = arith.constant 3 : index
    %19 = memref.load %arg2[%c0_14, %c3_15] : memref<4x4xf32, #tpu.memory_space<smem>>
    %20 = vector.broadcast %19 : f32 to vector<1x256xf32>
    %21 = arith.mulf %18, %20 : vector<1x256xf32>
    %22 = arith.addf %16, %21 : vector<1x256xf32>
    %c0_16 = arith.constant 0 : index
    %c0_17 = arith.constant 0 : index
    %c0_18 = arith.constant 0 : index
    %23 = vector.load %arg4[%c0_16, %c0_17, %c0_18] : memref<1x4x256xf32, #tpu.memory_space<vmem>>, vector<1x1x256xf32>
    %24 = vector.shape_cast %23 : vector<1x1x256xf32> to vector<1x256xf32>
    %25 = vector.shape_cast %22 : vector<1x256xf32> to vector<1x1x256xf32>
    tpu.vector_store %arg4[%c0_16, %c0_17, %c0_18], %25 {strides = array<i32>} : memref<1x4x256xf32, #tpu.memory_space<vmem>>, vector<1x1x256xf32>,
    %c0_19 = arith.constant 0 : index
    %c0_20 = arith.constant 0 : index
    %c0_21 = arith.constant 0 : index
    %26 = vector.load %arg3[%c0_19, %c0_20, %c0_21] : memref<1x4x256xf32, #tpu.memory_space<vmem>>, vector<1x1x256xf32>
    %27 = vector.shape_cast %26 : vector<1x1x256xf32> to vector<1x256xf32>
    %c1_22 = arith.constant 1 : index
    %c0_23 = arith.constant 0 : index
    %28 = memref.load %arg2[%c1_22, %c0_23] : memref<4x4xf32, #tpu.memory_space<smem>>
    %29 = vector.broadcast %28 : f32 to vector<1x256xf32>
    %30 = arith.mulf %27, %29 : vector<1x256xf32>
    %c0_24 = arith.constant 0 : index
    %c1_25 = arith.constant 1 : index
    %c0_26 = arith.constant 0 : index
    %31 = vector.load %arg3[%c0_24, %c1_25, %c0_26] : memref<1x4x256xf32, #tpu.memory_space<vmem>>, vector<1x1x256xf32>
    %32 = vector.shape_cast %31 : vector<1x1x256xf32> to vector<1x256xf32>
    %c1_27 = arith.constant 1 : index
    %c1_28 = arith.constant 1 : index
    %33 = memref.load %arg2[%c1_27, %c1_28] : memref<4x4xf32, #tpu.memory_space<smem>>
    %34 = vector.broadcast %33 : f32 to vector<1x256xf32>
    %35 = arith.mulf %32, %34 : vector<1x256xf32>
    %36 = arith.addf %30, %35 : vector<1x256xf32>
    %c0_29 = arith.constant 0 : index
    %c2_30 = arith.constant 2 : index
    %c0_31 = arith.constant 0 : index
    %37 = vector.load %arg3[%c0_29, %c2_30, %c0_31] : memref<1x4x256xf32, #tpu.memory_space<vmem>>, vector<1x1x256xf32>
    %38 = vector.shape_cast %37 : vector<1x1x256xf32> to vector<1x256xf32>
    %c1_32 = arith.constant 1 : index
    %c2_33 = arith.constant 2 : index
    %39 = memref.load %arg2[%c1_32, %c2_33] : memref<4x4xf32, #tpu.memory_space<smem>>
    %40 = vector.broadcast %39 : f32 to vector<1x256xf32>
    %41 = arith.mulf %38, %40 : vector<1x256xf32>
    %42 = arith.addf %36, %41 : vector<1x256xf32>
    %c0_34 = arith.constant 0 : index
    %c3_35 = arith.constant 3 : index
    %c0_36 = arith.constant 0 : index
    %43 = vector.load %arg3[%c0_34, %c3_35, %c0_36] : memref<1x4x256xf32, #tpu.memory_space<vmem>>, vector<1x1x256xf32>
    %44 = vector.shape_cast %43 : vector<1x1x256xf32> to vector<1x256xf32>
    %c1_37 = arith.constant 1 : index
    %c3_38 = arith.constant 3 : index
    %45 = memref.load %arg2[%c1_37, %c3_38] : memref<4x4xf32, #tpu.memory_space<smem>>
    %46 = vector.broadcast %45 : f32 to vector<1x256xf32>
    %47 = arith.mulf %44, %46 : vector<1x256xf32>
    %48 = arith.addf %42, %47 : vector<1x256xf32>
    %c0_39 = arith.constant 0 : index
    %c1_40 = arith.constant 1 : index
    %c0_41 = arith.constant 0 : index
    %49 = vector.load %arg4[%c0_39, %c1_40, %c0_41] : memref<1x4x256xf32, #tpu.memory_space<vmem>>, vector<1x1x256xf32>
    %50 = vector.shape_cast %49 : vector<1x1x256xf32> to vector<1x256xf32>
    %51 = vector.shape_cast %48 : vector<1x256xf32> to vector<1x1x256xf32>
    tpu.vector_store %arg4[%c0_39, %c1_40, %c0_41], %51 {strides = array<i32>} : memref<1x4x256xf32, #tpu.memory_space<vmem>>, vector<1x1x256xf32>,
    %c0_42 = arith.constant 0 : index
    %c0_43 = arith.constant 0 : index
    %c0_44 = arith.constant 0 : index
    %52 = vector.load %arg3[%c0_42, %c0_43, %c0_44] : memref<1x4x256xf32, #tpu.memory_space<vmem>>, vector<1x1x256xf32>
    %53 = vector.shape_cast %52 : vector<1x1x256xf32> to vector<1x256xf32>
    %c2_45 = arith.constant 2 : index
    %c0_46 = arith.constant 0 : index
    %54 = memref.load %arg2[%c2_45, %c0_46] : memref<4x4xf32, #tpu.memory_space<smem>>
    %55 = vector.broadcast %54 : f32 to vector<1x256xf32>
    %56 = arith.mulf %53, %55 : vector<1x256xf32>
    %c0_47 = arith.constant 0 : index
    %c1_48 = arith.constant 1 : index
    %c0_49 = arith.constant 0 : index
    %57 = vector.load %arg3[%c0_47, %c1_48, %c0_49] : memref<1x4x256xf32, #tpu.memory_space<vmem>>, vector<1x1x256xf32>
    %58 = vector.shape_cast %57 : vector<1x1x256xf32> to vector<1x256xf32>
    %c2_50 = arith.constant 2 : index
    %c1_51 = arith.constant 1 : index
    %59 = memref.load %arg2[%c2_50, %c1_51] : memref<4x4xf32, #tpu.memory_space<smem>>
    %60 = vector.broadcast %59 : f32 to vector<1x256xf32>
    %61 = arith.mulf %58, %60 : vector<1x256xf32>
    %62 = arith.addf %56, %61 : vector<1x256xf32>
    %c0_52 = arith.constant 0 : index
    %c2_53 = arith.constant 2 : index
    %c0_54 = arith.constant 0 : index
    %63 = vector.load %arg3[%c0_52, %c2_53, %c0_54] : memref<1x4x256xf32, #tpu.memory_space<vmem>>, vector<1x1x256xf32>
    %64 = vector.shape_cast %63 : vector<1x1x256xf32> to vector<1x256xf32>
    %c2_55 = arith.constant 2 : index
    %c2_56 = arith.constant 2 : index
    %65 = memref.load %arg2[%c2_55, %c2_56] : memref<4x4xf32, #tpu.memory_space<smem>>
    %66 = vector.broadcast %65 : f32 to vector<1x256xf32>
    %67 = arith.mulf %64, %66 : vector<1x256xf32>
    %68 = arith.addf %62, %67 : vector<1x256xf32>
    %c0_57 = arith.constant 0 : index
    %c3_58 = arith.constant 3 : index
    %c0_59 = arith.constant 0 : index
    %69 = vector.load %arg3[%c0_57, %c3_58, %c0_59] : memref<1x4x256xf32, #tpu.memory_space<vmem>>, vector<1x1x256xf32>
    %70 = vector.shape_cast %69 : vector<1x1x256xf32> to vector<1x256xf32>
    %c2_60 = arith.constant 2 : index
    %c3_61 = arith.constant 3 : index
    %71 = memref.load %arg2[%c2_60, %c3_61] : memref<4x4xf32, #tpu.memory_space<smem>>
    %72 = vector.broadcast %71 : f32 to vector<1x256xf32>
    %73 = arith.mulf %70, %72 : vector<1x256xf32>
    %74 = arith.addf %68, %73 : vector<1x256xf32>
    %c0_62 = arith.constant 0 : index
    %c2_63 = arith.constant 2 : index
    %c0_64 = arith.constant 0 : index
    %75 = vector.load %arg4[%c0_62, %c2_63, %c0_64] : memref<1x4x256xf32, #tpu.memory_space<vmem>>, vector<1x1x256xf32>
    %76 = vector.shape_cast %75 : vector<1x1x256xf32> to vector<1x256xf32>
    %77 = vector.shape_cast %74 : vector<1x256xf32> to vector<1x1x256xf32>
    tpu.vector_store %arg4[%c0_62, %c2_63, %c0_64], %77 {strides = array<i32>} : memref<1x4x256xf32, #tpu.memory_space<vmem>>, vector<1x1x256xf32>,
    %c0_65 = arith.constant 0 : index
    %c0_66 = arith.constant 0 : index
    %c0_67 = arith.constant 0 : index
    %78 = vector.load %arg3[%c0_65, %c0_66, %c0_67] : memref<1x4x256xf32, #tpu.memory_space<vmem>>, vector<1x1x256xf32>
    %79 = vector.shape_cast %78 : vector<1x1x256xf32> to vector<1x256xf32>
    %c3_68 = arith.constant 3 : index
    %c0_69 = arith.constant 0 : index
    %80 = memref.load %arg2[%c3_68, %c0_69] : memref<4x4xf32, #tpu.memory_space<smem>>
    %81 = vector.broadcast %80 : f32 to vector<1x256xf32>
    %82 = arith.mulf %79, %81 : vector<1x256xf32>
    %c0_70 = arith.constant 0 : index
    %c1_71 = arith.constant 1 : index
    %c0_72 = arith.constant 0 : index
    %83 = vector.load %arg3[%c0_70, %c1_71, %c0_72] : memref<1x4x256xf32, #tpu.memory_space<vmem>>, vector<1x1x256xf32>
    %84 = vector.shape_cast %83 : vector<1x1x256xf32> to vector<1x256xf32>
    %c3_73 = arith.constant 3 : index
    %c1_74 = arith.constant 1 : index
    %85 = memref.load %arg2[%c3_73, %c1_74] : memref<4x4xf32, #tpu.memory_space<smem>>
    %86 = vector.broadcast %85 : f32 to vector<1x256xf32>
    %87 = arith.mulf %84, %86 : vector<1x256xf32>
    %88 = arith.addf %82, %87 : vector<1x256xf32>
    %c0_75 = arith.constant 0 : index
    %c2_76 = arith.constant 2 : index
    %c0_77 = arith.constant 0 : index
    %89 = vector.load %arg3[%c0_75, %c2_76, %c0_77] : memref<1x4x256xf32, #tpu.memory_space<vmem>>, vector<1x1x256xf32>
    %90 = vector.shape_cast %89 : vector<1x1x256xf32> to vector<1x256xf32>
    %c3_78 = arith.constant 3 : index
    %c2_79 = arith.constant 2 : index
    %91 = memref.load %arg2[%c3_78, %c2_79] : memref<4x4xf32, #tpu.memory_space<smem>>
    %92 = vector.broadcast %91 : f32 to vector<1x256xf32>
    %93 = arith.mulf %90, %92 : vector<1x256xf32>
    %94 = arith.addf %88, %93 : vector<1x256xf32>
    %c0_80 = arith.constant 0 : index
    %c3_81 = arith.constant 3 : index
    %c0_82 = arith.constant 0 : index
    %95 = vector.load %arg3[%c0_80, %c3_81, %c0_82] : memref<1x4x256xf32, #tpu.memory_space<vmem>>, vector<1x1x256xf32>
    %96 = vector.shape_cast %95 : vector<1x1x256xf32> to vector<1x256xf32>
    %c3_83 = arith.constant 3 : index
    %c3_84 = arith.constant 3 : index
    %97 = memref.load %arg2[%c3_83, %c3_84] : memref<4x4xf32, #tpu.memory_space<smem>>
    %98 = vector.broadcast %97 : f32 to vector<1x256xf32>
    %99 = arith.mulf %96, %98 : vector<1x256xf32>
    %100 = arith.addf %94, %99 : vector<1x256xf32>
    %c0_85 = arith.constant 0 : index
    %c3_86 = arith.constant 3 : index
    %c0_87 = arith.constant 0 : index
    %101 = vector.load %arg4[%c0_85, %c3_86, %c0_87] : memref<1x4x256xf32, #tpu.memory_space<vmem>>, vector<1x1x256xf32>
    %102 = vector.shape_cast %101 : vector<1x1x256xf32> to vector<1x256xf32>
    %103 = vector.shape_cast %100 : vector<1x256xf32> to vector<1x1x256xf32>
    tpu.vector_store %arg4[%c0_85, %c3_86, %c0_87], %103 {strides = array<i32>} : memref<1x4x256xf32, #tpu.memory_space<vmem>>, vector<1x1x256xf32>,
    return
  }
  func.func @transform_0(%arg0: i32, %arg1: i32) -> (i32, i32) {
    %c0_i32 = arith.constant 0 : i32
    %c0_i32_0 = arith.constant 0 : i32
    %c0_i32_1 = arith.constant 0 : i32
    return %c0_i32, %c0_i32_0 : i32, i32
  }
  func.func @transform_1(%arg0: i32, %arg1: i32) -> (i32, i32, i32) {
    %c0_i32 = arith.constant 0 : i32
    %c0_i32_0 = arith.constant 0 : i32
    return %arg0, %c0_i32, %arg1 : i32, i32, i32
  }
  func.func @transform_2(%arg0: i32, %arg1: i32) -> (i32, i32, i32) {
    %c0_i32 = arith.constant 0 : i32
    %c0_i32_0 = arith.constant 0 : i32
    return %arg0, %c0_i32, %arg1 : i32, i32, i32
  }
}

</mosaic_0001>

<llo_original>
// kernel: tpu_custom_call.1
$region0: #{tpu_custom_call.1}
  #allocation0 [shape = 'u32[]', space=smem, size = 0x4, offset = 0x4, fixed_abs, tag = 'smem constant byte address 0x4 - core index']
  #allocation1 [shape = 'u32[144,128]{1,0:T(1,128)}', space=vmem, size = 0x12000, scoped, tag = 'internal scratch']
  %s0 = inlined_call_operand.hbm [shape: f32[4,4], index: 0, kind: input, shape index: {}]
  %s1 = inlined_call_operand.hbm [shape: f32[2,4,256], index: 1, kind: input, shape index: {}]
  %s2 = inlined_call_operand.hbm [shape: f32[2,4,256], index: 2, kind: output, shape index: {}]
  %s3 = sld [smem:[#allocation0]]
  $region49: #{tpu_custom_call.1} parent=0
    _
  %s5 = ssub.s32 1, %s3
  %s6 = scalar_select 0, %s5, %s3
  $region1: #{tpu_custom_call.1} parent=0
    #allocation2 [shape = 'u8[2048]{0}', space=smem, size = 0x800, scoped, tag = 'input window, operand 0, single buffered']
    #allocation3 [shape = 's32[2]{0}', space=sflag, size = 0x8, scoped, tag = 'scoped memory for tpu_custom_call.1']
    #allocation4 [shape = 's32[2]{0}', space=sflag, size = 0x8, scoped, tag = 'scoped memory for tpu_custom_call.1']
    #allocation5 [shape = 's32[2]{0}', space=sflag, size = 0x8, scoped, tag = 'scoped memory for tpu_custom_call.1']
    #allocation6 [shape = 'u8[8192]{0}', space=vmem, size = 0x2000, scoped, tag = 'input window, operand 1']
    #allocation7 [shape = 'u8[8192]{0}', space=vmem, size = 0x2000, scoped, tag = 'output window, operand 0']
    %7 = vsyncpa [#allocation5], 0
    %8 = vsyncpa [#allocation3], 0
    %s9 = scalar_lea.sflag [#allocation3], 1
    %10 = vsyncpa %s9, 0
    %11 = vsyncpa [#allocation4], 0
    %s12 = scalar_lea.sflag [#allocation4], 1
    %13 = vsyncpa %s12, 0
    loop: start=0, step=1, limit=4
    $region2: #{tpu_custom_call.1} parent=1 // loop_pre_header
      _
    $region3: #{tpu_custom_call.1} parent=1 // loop_header
      %s15 = sphi 0, %s19
      %p16 = scmp.ge.s32.totalorder %s15, 4
      %s22 = sphi 0, %s34
      %s23 = sphi 0, %s30
      %s24 = sphi 0, %s22
      %s25 = sphi 0, %s23
      %s26 = sphi 0, %s24
      %s27 = sphi 0, %s25
      %s35 = sphi 0, %s35
      %s37 = sphi 0, %s35
      %s38 = sphi 0, %s37
      %s52 = sphi 0, %s38
      %s60 = sphi 0, %s62
      %s63 = sphi 0, %s60
      %s64 = sphi 0, %s63
      %s80 = sphi 0, %s64
      %s88 = sphi 0, %s90
      %s91 = sphi 0, %s88
      %s92 = sphi 0, %s91
      %s108 = sphi 0, %s92
    $region4: #{tpu_custom_call.1} parent=1 // loop_header_branch
      %18 = sbr.rel (%p16) target = $region8
    $region5: #{tpu_custom_call.1} parent=1 // loop_body
      %s20 = ssub.s32 %s15, 1
      %s21 = ssub.s32 %s15, 2
      %s28 = sadd.s32 1, %s23
      %p29 = scmp.ge.s32.totalorder %s28, 1
      %s30 = scalar_select %p29, 0, %s28
      %s31 = sadd.s32 1, %s22
      %s32 = scalar_select %p29, %s31, %s22
      %p33 = scmp.ge.s32.totalorder %s32, 2
      %s34 = scalar_select %p33, 0, %s32
      %s36 = sadd.s32 %s35, 1
      %p39 = scmp.eq.s32.totalorder %s15, 1
      %p40 = scmp.ne.s32.totalorder %s35, %s37
      %p41 = scmp.eq.s32.totalorder %s15, 0
      %p42 = por %p40, %p41
      %p43 = scmp.ne.s32.totalorder %s35, %s37
      %p44 = scmp.eq.s32.totalorder %s20, 1
      %p45 = por %p43, %p44
      %p46 = scmp.ne.s32.totalorder %s37, %s38
      %p47 = scmp.eq.s32.totalorder %s20, 0
      %p48 = por %p46, %p47
      %p49 = scmp.ne.s32.totalorder %s37, %s38
      %p50 = scmp.eq.s32.totalorder %s21, 1
      %p51 = por %p49, %p50
      %p53 = scmp.ne.s32.totalorder %s38, %s52
      %p54 = scmp.eq.s32.totalorder %s21, 0
      %p55 = por %p53, %p54
      %s56 = ssub.s32 %s22, %s34
      %s57 = ssub.s32 %s23, %s30
      %s58 = sor.u32 %s56, %s57
      %p59 = scmp.eq.s32.totalorder %s58, 0
      %s61 = sadd.s32 %s60, 1
      %s62 = scalar_select %p59, %s60, %s61
      %p65 = pneg %p59
      %p66 = scmp.eq.s32.totalorder %s15, 1
      %p67 = por %p65, %p66
      %p68 = scmp.ne.s32.totalorder %s60, %s63
      %p69 = scmp.eq.s32.totalorder %s15, 0
      %p70 = por %p68, %p69
      %p71 = scmp.ne.s32.totalorder %s60, %s63
      %p72 = scmp.eq.s32.totalorder %s20, 1
      %p73 = por %p71, %p72
      %p74 = scmp.ne.s32.totalorder %s63, %s64
      %p75 = scmp.eq.s32.totalorder %s20, 0
      %p76 = por %p74, %p75
      %p77 = scmp.ne.s32.totalorder %s63, %s64
      %p78 = scmp.eq.s32.totalorder %s21, 1
      %p79 = por %p77, %p78
      %p81 = scmp.ne.s32.totalorder %s64, %s80
      %p82 = scmp.eq.s32.totalorder %s21, 0
      %p83 = por %p81, %p82
      %s84 = ssub.s32 %s22, %s34
      %s85 = ssub.s32 %s23, %s30
      %s86 = sor.u32 %s84, %s85
      %p87 = scmp.eq.s32.totalorder %s86, 0
      %s89 = sadd.s32 %s88, 1
      %s90 = scalar_select %p87, %s88, %s89
      %p93 = pneg %p87
      %p94 = scmp.eq.s32.totalorder %s15, 1
      %p95 = por %p93, %p94
      %p96 = scmp.ne.s32.totalorder %s88, %s91
      %p97 = scmp.eq.s32.totalorder %s15, 0
      %p98 = por %p96, %p97
      %p99 = scmp.ne.s32.totalorder %s88, %s91
      %p100 = scmp.eq.s32.totalorder %s20, 1
      %p101 = por %p99, %p100
      %p102 = scmp.ne.s32.totalorder %s91, %s92
      %p103 = scmp.eq.s32.totalorder %s20, 0
      %p104 = por %p102, %p103
      %p105 = scmp.ne.s32.totalorder %s91, %s92
      %p106 = scmp.eq.s32.totalorder %s21, 1
      %p107 = por %p105, %p106
      %p109 = scmp.ne.s32.totalorder %s92, %s108
      %p110 = scmp.eq.s32.totalorder %s21, 0
      %p111 = por %p109, %p110
      %p112 = scmp.le.s32.totalorder 1, %s15
      %p113 = scmp.lt.s32.totalorder %s15, 3
      %p114 = pnand %p112, %p113
      %p115 = pneg %p114
      // Predicated region
      $region9: #{tpu_custom_call.1} parent=5 // pred_check
        _
      $region10: #{tpu_custom_call.1} parent=5 // pred_check_branch
        %117 = sbr.rel (%p114) target = $region12
      $region11: #{tpu_custom_call.1} parent=5 // pred_region
        %s118 = ssub.s32 %s15, 1
        // Predicated region
        $region13: #{tpu_custom_call.1} parent=11 // pred_check
          %p119 = pneg %p48
        $region14: #{tpu_custom_call.1} parent=11 // pred_check_branch
          %121 = sbr.rel (%p119) target = $region16
        $region15: #{tpu_custom_call.1} parent=11 // pred_region
          %s123 = ssub.s32 64, 64
          %124 = vsyncadd [#allocation5], %s123
          %127 = dma.hbm_to_smem %s0, 64, [#allocation2], [#allocation5]
        $region16: #{tpu_custom_call.1} parent=11 // pred_fallthru
          _
      $region12: #{tpu_custom_call.1} parent=5 // pred_fallthru
        _
      %p128 = scmp.lt.s32.totalorder %s15, 2
      // Predicated region
      $region17: #{tpu_custom_call.1} parent=5 // pred_check
        %p129 = pneg %p128
      $region18: #{tpu_custom_call.1} parent=5 // pred_check_branch
        %131 = sbr.rel (%p129) target = $region20
      $region19: #{tpu_custom_call.1} parent=5 // pred_region
        // Predicated region
        $region21: #{tpu_custom_call.1} parent=19 // pred_check
          %p132 = pneg %p70
        $region22: #{tpu_custom_call.1} parent=19 // pred_check_branch
          %134 = sbr.rel (%p132) target = $region24
        $region23: #{tpu_custom_call.1} parent=19 // pred_region
          %s135 = sand.u32 %s60, 1
          %s136 = scalar_lea.sflag [#allocation3], %s135
          %s137 = sand.u32 %s60, 1
          %s138 = smul.addr %s137, 8
          %s139 = scalar_lea.vmem [#allocation6], %s138
          %s140 = smul.u32 2, %s23
          %s142 = ssub.s32 128, 128
          %143 = vsyncadd %s136, %s142
          %s144 = smul.addr %s22, 2
          %s145 = sadd.s32 %s140, %s144
          %s146 = smul.addr %s145, 64
          %s147 = scalar_lea.hbm %s1, %s146
          %s149 = sshll.u32 %s139, 4
          %s150 = int_to_ptr.vmem [resolvable:$true] %s149
          %152 = dma.hbm_to_vmem [thread:$0]  %s147, 128, %s150, %s136
        $region24: #{tpu_custom_call.1} parent=19 // pred_fallthru
          _
      $region20: #{tpu_custom_call.1} parent=5 // pred_fallthru
        _
      %p153 = scmp.le.s32.totalorder 1, %s15
      %p154 = scmp.lt.s32.totalorder %s15, 3
      %p155 = pnand %p153, %p154
      %p156 = pneg %p155
      // Predicated region
      $region25: #{tpu_custom_call.1} parent=5 // pred_check
        _
      $region26: #{tpu_custom_call.1} parent=5 // pred_check_branch
        %158 = sbr.rel (%p155) target = $region28
      $region27: #{tpu_custom_call.1} parent=5 // pred_region
        %s159 = ssub.s32 %s15, 1
        // Predicated region
        $region29: #{tpu_custom_call.1} parent=27 // pred_check
          %p160 = pneg %p48
        $region30: #{tpu_custom_call.1} parent=27 // pred_check_branch
          %162 = sbr.rel (%p160) target = $region32
        $region31: #{tpu_custom_call.1} parent=27 // pred_region
          %163 = dma.done [#allocation5], 64
        $region32: #{tpu_custom_call.1} parent=27 // pred_fallthru
          _
        %s164 = sand.u32 %s63, 1
        %s165 = scalar_lea.sflag [#allocation3], %s164
        %s166 = sand.u32 %s63, 1
        %s167 = smul.addr %s166, 8
        %s168 = scalar_lea.vmem [#allocation6], %s167
        // Predicated region
        $region33: #{tpu_custom_call.1} parent=27 // pred_check
          %p169 = pneg %p76
        $region34: #{tpu_custom_call.1} parent=27 // pred_check_branch
          %171 = sbr.rel (%p169) target = $region36
        $region35: #{tpu_custom_call.1} parent=27 // pred_region
          %172 = dma.done %s165, 128
        $region36: #{tpu_custom_call.1} parent=27 // pred_fallthru
          _
        %173 = sfence
        %p174 = pneg %p48
        %p175 = pneg %p45
        %s176 = sand.u32 %s63, 1
        %s177 = scalar_lea.sflag [#allocation3], %s176
        %s178 = sand.u32 %s63, 1
        %s179 = smul.addr %s178, 8
        %s180 = scalar_lea.vmem [#allocation6], %s179
        %p181 = pneg %p76
        %p182 = pneg %p73
        %p183 = pneg %p104
        %p184 = pneg %p101
        %s185 = sand.u32 %s91, 1
        %s186 = scalar_lea.sflag [#allocation4], %s185
        %s187 = sand.u32 %s91, 1
        %s188 = smul.addr %s187, 8
        %s189 = scalar_lea.vmem [#allocation7], %s188
        %s190 = smul.u32 2, %s25
        %s191 = smul.u32 2, %s25
        %v192 = vld [vmem:[%s168] ss:$4 sm:$0x3]
        %s193 = sld [smem:[#allocation2]]
        %v194 = vstv %s193
        %v195 = vmul.f32 %v192, %v194
        %s196 = scalar_lea.vmem %s168, 1 [#allocation6]
        %v197 = vld [vmem:[%s196] ss:$4 sm:$0x3]
        %s198 = sld [smem:[#allocation2 + $0x1]]
        %v199 = vstv %s198
        %v200 = vmul.f32 %v197, %v199
        %v201 = vadd.f32 %v195, %v200
        %s202 = scalar_lea.vmem %s168, 2 [#allocation6]
        %v203 = vld [vmem:[%s202] ss:$4 sm:$0x3]
        %s204 = sld [smem:[#allocation2 + $0x2]]
        %v205 = vstv %s204
        %v206 = vmul.f32 %v203, %v205
        %v207 = vadd.f32 %v201, %v206
        %s208 = scalar_lea.vmem %s168, 3 [#allocation6]
        %v209 = vld [vmem:[%s208] ss:$4 sm:$0x3]
        %s210 = sld [smem:[#allocation2 + $0x3]]
        %v211 = vstv %s210
        %v212 = vmul.f32 %v209, %v211
        %v213 = vadd.f32 %v207, %v212
        %v214 = vlaneseq
        %vm215 = vcmp.ge.s32.totalorder %v214, 0
        %vm216 = vcmp.lt.s32.totalorder %v214, 256
        %vm217 = vmand %vm215, %vm216
        %218 = vst.msk [vmem:[%s189] ss:$4 sm:$0x3] %vm217, %v213
        %v219 = vld [vmem:[%s168] ss:$4 sm:$0x3]
        %s220 = sld [smem:[#allocation2 + $0x80]]
        %v221 = vstv %s220
        %v222 = vmul.f32 %v219, %v221
        %v223 = vld [vmem:[%s196] ss:$4 sm:$0x3]
        %s224 = sld [smem:[#allocation2 + $0x81]]
        %v225 = vstv %s224
        %v226 = vmul.f32 %v223, %v225
        %v227 = vadd.f32 %v222, %v226
        %v228 = vld [vmem:[%s202] ss:$4 sm:$0x3]
        %s229 = sld [smem:[#allocation2 + $0x82]]
        %v230 = vstv %s229
        %v231 = vmul.f32 %v228, %v230
        %v232 = vadd.f32 %v227, %v231
        %v233 = vld [vmem:[%s208] ss:$4 sm:$0x3]
        %s234 = sld [smem:[#allocation2 + $0x83]]
        %v235 = vstv %s234
        %v236 = vmul.f32 %v233, %v235
        %v237 = vadd.f32 %v232, %v236
        %s238 = scalar_lea.vmem %s189, 1 [#allocation7]
        %239 = vst.msk [vmem:[%s238] ss:$4 sm:$0x3] %vm217, %v237
        %v240 = vld [vmem:[%s168] ss:$4 sm:$0x3]
        %s241 = sld [smem:[#allocation2 + $0x100]]
        %v242 = vstv %s241
        %v243 = vmul.f32 %v240, %v242
        %v244 = vld [vmem:[%s196] ss:$4 sm:$0x3]
        %s245 = sld [smem:[#allocation2 + $0x101]]
        %v246 = vstv %s245
        %v247 = vmul.f32 %v244, %v246
        %v248 = vadd.f32 %v243, %v247
        %v249 = vld [vmem:[%s202] ss:$4 sm:$0x3]
        %s250 = sld [smem:[#allocation2 + $0x102]]
        %v251 = vstv %s250
        %v252 = vmul.f32 %v249, %v251
        %v253 = vadd.f32 %v248, %v252
        %v254 = vld [vmem:[%s208] ss:$4 sm:$0x3]
        %s255 = sld [smem:[#allocation2 + $0x103]]
        %v256 = vstv %s255
        %v257 = vmul.f32 %v254, %v256
        %v258 = vadd.f32 %v253, %v257
        %s259 = scalar_lea.vmem %s189, 2 [#allocation7]
        %260 = vst.msk [vmem:[%s259] ss:$4 sm:$0x3] %vm217, %v258
        %v261 = vld [vmem:[%s168] ss:$4 sm:$0x3]
        %s262 = sld [smem:[#allocation2 + $0x180]]
        %v263 = vstv %s262
        %v264 = vmul.f32 %v261, %v263
        %v265 = vld [vmem:[%s196] ss:$4 sm:$0x3]
        %s266 = sld [smem:[#allocation2 + $0x181]]
        %v267 = vstv %s266
        %v268 = vmul.f32 %v265, %v267
        %v269 = vadd.f32 %v264, %v268
        %v270 = vld [vmem:[%s202] ss:$4 sm:$0x3]
        %s271 = sld [smem:[#allocation2 + $0x182]]
        %v272 = vstv %s271
        %v273 = vmul.f32 %v270, %v272
        %v274 = vadd.f32 %v269, %v273
        %v275 = vld [vmem:[%s208] ss:$4 sm:$0x3]
        %s276 = sld [smem:[#allocation2 + $0x183]]
        %v277 = vstv %s276
        %v278 = vmul.f32 %v275, %v277
        %v279 = vadd.f32 %v274, %v278
        %s280 = scalar_lea.vmem %s189, 3 [#allocation7]
        %281 = vst.msk [vmem:[%s280] ss:$4 sm:$0x3] %vm217, %v279
        %s282 = sand.u32 %s91, 1
        %s283 = scalar_lea.sflag [#allocation4], %s282
        %s284 = sand.u32 %s91, 1
        %s285 = smul.addr %s284, 8
        %s286 = scalar_lea.vmem [#allocation7], %s285
        // Predicated region
        $region37: #{tpu_custom_call.1} parent=27 // pred_check
          %p287 = pneg %p101
        $region38: #{tpu_custom_call.1} parent=27 // pred_check_branch
          %289 = sbr.rel (%p287) target = $region40
        $region39: #{tpu_custom_call.1} parent=27 // pred_region
          %s290 = smul.u32 2, %s25
          %s292 = ssub.s32 128, 128
          %293 = vsyncadd %s283, %s292
          %s294 = smul.addr %s24, 2
          %s295 = sadd.s32 %s290, %s294
          %s296 = smul.addr %s295, 64
          %s297 = scalar_lea.hbm %s2, %s296
          %s299 = sshll.u32 %s286, 4
          %s300 = int_to_ptr.vmem [resolvable:$true] %s299
          %302 = dma.vmem_to_hbm [thread:$0]  %s300, 128, %s297, %s283
        $region40: #{tpu_custom_call.1} parent=27 // pred_fallthru
          _
      $region28: #{tpu_custom_call.1} parent=5 // pred_fallthru
        _
      %p303 = scmp.le.s32.totalorder 2, %s15
      // Predicated region
      $region41: #{tpu_custom_call.1} parent=5 // pred_check
        %p304 = pneg %p303
      $region42: #{tpu_custom_call.1} parent=5 // pred_check_branch
        %306 = sbr.rel (%p304) target = $region44
      $region43: #{tpu_custom_call.1} parent=5 // pred_region
        %s307 = ssub.s32 %s15, 2
        // Predicated region
        $region45: #{tpu_custom_call.1} parent=43 // pred_check
          %p308 = pneg %p107
        $region46: #{tpu_custom_call.1} parent=43 // pred_check_branch
          %310 = sbr.rel (%p308) target = $region48
        $region47: #{tpu_custom_call.1} parent=43 // pred_region
          %s311 = sand.u32 %s92, 1
          %s312 = scalar_lea.sflag [#allocation4], %s311
          %s313 = sand.u32 %s92, 1
          %s314 = smul.addr %s313, 8
          %s315 = scalar_lea.vmem [#allocation7], %s314
          %316 = dma.done %s312, 128
        $region48: #{tpu_custom_call.1} parent=43 // pred_fallthru
          _
      $region44: #{tpu_custom_call.1} parent=5 // pred_fallthru
        _
    $region6: #{tpu_custom_call.1} parent=1 // loop_footer
      %s19 = sadd.s32 1, %s15
    $region7: #{tpu_custom_call.1} parent=1 // loop_footer_branch
      %14 = sbr.rel target = $region3
    $region8: #{tpu_custom_call.1} parent=1 // loop_exit
      _
    %317 = vsyncpa [#allocation3], 1
    %s318 = scalar_lea.sflag [#allocation3], 1
    %319 = vsyncpa %s318, 1
    %320 = vsyncpa [#allocation4], 1
    %s321 = scalar_lea.sflag [#allocation4], 1
    %322 = vsyncpa %s321, 1
    %323 = vsyncpa [#allocation5], 1
    %s324 = scalar_lea.sflag [#allocation5], 1
    %325 = vsyncpa %s324, 1

</llo_original>
